<compile_context>
chip_gen: v5e
topology: v5e:2x2
jax: 0.10.0
libtpu: 0.0.40
codegen_flags: <defaults>
</compile_context>

<pallas_src>
import functools
import inspect

import jax
import jax.numpy as jnp
from jax import lax
from jax.experimental import pallas as pl
from jax.experimental.pallas import tpu as pltpu

_LANES = 128
_MAX_TILE_ROWS = 2048      # 2048 x 128 f32 = 1 MiB per input per buffer
_NUM_SUMS = 8
_UNROLL = 8

# Defensive lookups so the script also runs on slightly older jax versions.
_ARBITRARY = getattr(pltpu, "ARBITRARY", "arbitrary")
_PARALLEL = getattr(pltpu, "PARALLEL", "parallel")
_CORE_PARALLEL = getattr(pltpu, "CORE_PARALLEL", _PARALLEL)
_CompilerParams = getattr(pltpu, "CompilerParams", None) or getattr(
    pltpu, "TPUCompilerParams")
_FORI_HAS_UNROLL = "unroll" in inspect.signature(lax.fori_loop).parameters


def _fori(lo, hi, body, init, unroll):
    if _FORI_HAS_UNROLL:
        return lax.fori_loop(lo, hi, body, init, unroll=unroll)
    return lax.fori_loop(lo, hi, body, init)


def _round_down(x, m):
    return (x // m) * m


def _min_row_multiple(dtype):
    # f32 -> 8 sublanes, bf16 -> 16, int8/fp8 -> 32.
    itemsize = jnp.dtype(dtype).itemsize
    return 8 * max(1, 4 // itemsize)


def _num_tensorcores():
    """(cores_per_chip, use CORE_PARALLEL split)."""
    try:
        kind = (jax.devices()[0].device_kind or "").lower()
    except Exception:
        return 1, False
    if "v7" in kind:
        return 2, True          # two TensorCores per chip -> real core split
    if "v4" in kind or "v5p" in kind:
        return 2, False         # megacore: plain "parallel" splits the axis
    return 1, False             # v5e / v6e: single TensorCore


_CORES, _CORE_SPLIT = _num_tensorcores()


def _sums_kernel(a_ref, b_ref, c_ref, out_ref, acc_ref, *,
                 rows, tile, inner, group, grouped, has_tail):
    """Accumulates per-lane partial sums of (a, b, c, aa, bb, cc, ac, bc).

    acc_ref: (8, acc_rows, 128) f32 scratch (one small slab per raw sum).
    out_ref: (1, 8, acc_rows, 128) block, written once per shard (epilogue).
    """
    p = pl.program_id(0)   # shard axis (core-parallel on multi-TC chips)
    i = pl.program_id(1)   # streaming / reduction axis

    @pl.when(i == 0)
    def _():
        acc_ref[...] = jnp.zeros_like(acc_ref)

    blk = p * inner + i                  # logical (unclamped) block index
    block_valid = rows - blk * tile      # number of real rows in this block

    if grouped:
        groups = tile // group

        def accumulate(masked):
            def body(g, carry):
                off = g * group
                if not isinstance(off, int):
                    off = pl.multiple_of(off, group)
                a = a_ref[pl.ds(off, group), :].astype(jnp.float32)
                b = b_ref[pl.ds(off, group), :].astype(jnp.float32)
                c = c_ref[pl.ds(off, group), :].astype(jnp.float32)
                if masked:
                    # Mask BEFORE any product so garbage rows (ragged tail /
                    # duplicated clamp block) never propagate NaN/Inf.
                    row = off + lax.broadcasted_iota(
                        jnp.int32, (group, _LANES), 0)
                    keep = row < block_valid
                    a = jnp.where(keep, a, 0.0)
                    b = jnp.where(keep, b, 0.0)
                    c = jnp.where(keep, c, 0.0)
                sa, sb, sc, saa, sbb, scc, sac, sbc = carry
                return (sa + a, sb + b, sc + c,
                        saa + a * a, sbb + b * b, scc + c * c,
                        sac + a * c, sbc + b * c)

            zero = jnp.zeros((group, _LANES), jnp.float32)
            carry = (zero,) * _NUM_SUMS
            if groups <= _UNROLL:
                for g in range(groups):      # fully static tiny loop
                    carry = body(g, carry)
            else:
                carry = _fori(0, groups, body, carry, unroll=_UNROLL)
            for k in range(_NUM_SUMS):
                acc_ref[k] += carry[k]

        if has_tail:
            # Fast mask-free path for all interior (full) blocks; only the
            # final partial / duplicated block pays the masking VPU cost.
            @pl.when(block_valid >= tile)
            def _():
                accumulate(False)

            @pl.when(block_valid < tile)
            def _():
                accumulate(True)
        else:
            accumulate(False)
    else:
        # Tiny single-block fallback (rows < one sublane group).
        a = a_ref[...].astype(jnp.float32)
        b = b_ref[...].astype(jnp.float32)
        c = c_ref[...].astype(jnp.float32)
        acc_ref[0] += a
        acc_ref[1] += b
        acc_ref[2] += c
        acc_ref[3] += a * a
        acc_ref[4] += b * b
        acc_ref[5] += c * c
        acc_ref[6] += a * c
        acc_ref[7] += b * c

    # One lane-dense store per shard, only in the epilogue step.
    @pl.when(i == inner - 1)
    def _():
        out_ref[0] = acc_ref[...]


def _raw_sums(a2, b2, c2, *, rows, tile, shards, inner, nb, group, grouped,
              has_tail, acc_rows, core_split):
    """Returns the 8 global raw sums as an f32 vector of shape (8,)."""
    if shards * inner > nb:
        # Keep DMAs in-bounds for the (at most one) duplicated trailing block
        # of the second shard; its contribution is zeroed by the in-kernel
        # mask (block_valid <= 0 there).
        def in_map(p, i):
            return (jnp.minimum(p * inner + i, nb - 1), 0)
    else:
        def in_map(p, i):
            return (p * inner + i, 0)

    in_spec = pl.BlockSpec((tile, _LANES), in_map)
    kernel = functools.partial(_sums_kernel, rows=rows, tile=tile, inner=inner,
                               group=group, grouped=grouped, has_tail=has_tail)

    if shards == 2:
        shard_sem = _CORE_PARALLEL if core_split else _PARALLEL
    else:
        shard_sem = _ARBITRARY

    partials = pl.pallas_call(
        kernel,
        out_shape=jax.ShapeDtypeStruct((shards, _NUM_SUMS, acc_rows, _LANES),
                                       jnp.float32),
        grid_spec=pltpu.PrefetchScalarGridSpec(
            num_scalar_prefetch=0,
            grid=(shards, inner),
            in_specs=[in_spec, in_spec, in_spec],
            out_specs=pl.BlockSpec((1, _NUM_SUMS, acc_rows, _LANES),
                                   lambda p, i: (p, 0, 0, 0)),
            scratch_shapes=[pltpu.VMEM((_NUM_SUMS, acc_rows, _LANES),
                                       jnp.float32)],
        ),
        compiler_params=_CompilerParams(
            dimension_semantics=(shard_sem, _ARBITRARY)),
    )(a2, b2, c2)

    # Tiny epilogue reduction over shards / sublanes / lanes in plain JAX.
    return jnp.sum(partials, axis=(0, 2, 3))


def _as_rows(x):
    """View x as a (rows, 128) lane-major slab.

    For the common case (numel % 128 == 0) this is a free reshape.  The ragged
    case pads only the final partial 128-lane row with zeros (which contribute
    nothing to any raw sum); it is a cold corner-case path.
    """
    flat = x.reshape(-1)
    rem = flat.shape[0] % _LANES
    if rem:
        flat = jnp.pad(flat, (0, _LANES - rem))
    return flat.reshape(-1, _LANES)


@jax.jit
def reg_forward(a, b, c):
    """Equivalent of REG.forward(a, b, c) = corr2(a, c) + corr2(b, c)."""
    assert a.shape == b.shape == c.shape
    n = int(a.size)

    a2, b2, c2 = _as_rows(a), _as_rows(b), _as_rows(c)
    rows = a2.shape[0]

    group = max(_min_row_multiple(x.dtype) for x in (a, b, c))
    if rows < group:
        tile = rows                                   # full-extent single block
    else:
        tile = min(_MAX_TILE_ROWS, _round_down(rows, group))
    nb = pl.cdiv(rows, tile)

    # Shard across TensorCores only when the chip actually has two of them and
    # there is enough work to amortize the (at most one) duplicated block.
    shards = 2 if (_CORES >= 2 and nb >= 8) else 1
    inner = pl.cdiv(nb, shards)
    has_tail = (shards * inner * tile) != rows
    grouped = (tile >= group) and (tile % group == 0)
    acc_rows = group if grouped else tile

    s = _raw_sums(a2, b2, c2, rows=rows, tile=tile, shards=shards, inner=inner,
                  nb=nb, group=group, grouped=grouped, has_tail=has_tail,
                  acc_rows=acc_rows, core_split=_CORE_SPLIT)

    nf = jnp.float32(n)
    sa, sb, sc = s[0], s[1], s[2]
    saa, sbb, scc = s[3], s[4], s[5]
    sac, sbc = s[6], s[7]

    ma, mb, mc = sa / nf, sb / nf, sc / nf
    # sum((x - mx) * (y - my)) = sum(x*y) - n * mx * my
    cov_ac = sac - nf * ma * mc
    cov_bc = sbc - nf * mb * mc
    var_a = saa - nf * ma * ma
    var_b = sbb - nf * mb * mb
    var_c = scc - nf * mc * mc

    r1 = cov_ac / jnp.sqrt(var_a * var_c)
    r2 = cov_bc / jnp.sqrt(var_b * var_c)
    return r1 + r2


def _reg_forward_ref(a, b, c):
    """Pure-JAX reference mirroring the PyTorch code literally."""
    def corr2(x, y):
        x = x - x.mean()
        y = y - y.mean()
        return jnp.sum(x * y) / jnp.sqrt(jnp.sum(x * x) * jnp.sum(y * y))
    return corr2(a, c) + corr2(b, c)


def _check(shape, key):
    ka, kb, kc = jax.random.split(key, 3)
    a = jax.random.normal(ka, shape, dtype=jnp.float32)
    b = jax.random.normal(kb, shape, dtype=jnp.float32)
    c = jax.random.normal(kc, shape, dtype=jnp.float32)
    out = jax.block_until_ready(reg_forward(a, b, c))
    ref = jax.block_until_ready(_reg_forward_ref(a, b, c))
    assert out.shape == ref.shape == ()
    assert jnp.allclose(out, ref, atol=2e-5, rtol=2e-5), (shape, out, ref)


if __name__ == "__main__":
    key = jax.random.PRNGKey(0)
    k1, k2, k3, k4 = jax.random.split(key, 4)

    # Primary small NCHW shape implied by the module.
    _check((2, 4, 16, 16), k1)
    # Single large block (1040 rows): exercises the unrolled group loop.
    _check((2, 5, 104, 128), k2)
    # Multi-block with ragged tail (2560 rows -> 2048 + 512 valid): exercises
    # the mask-free interior path and the masked last block.
    _check((4, 4, 160, 128), k3)
    # Tiny / non-multiple-of-128 case: lane-pad + tiny-tile fallback.
    _check((1, 3, 7, 13), k4)

    print("KERNEL_OK")
</pallas_src>

<mosaic_0001>
module attributes {stable_mosaic.version = 11 : i64} {
  func.func @_sums_kernel(%arg0: i32, %arg1: i32, %arg2: memref<16x128xf32, #tpu.memory_space<vmem>>, %arg3: memref<16x128xf32, #tpu.memory_space<vmem>>, %arg4: memref<16x128xf32, #tpu.memory_space<vmem>>, %arg5: memref<1x8x8x128xf32, #tpu.memory_space<vmem>>, %arg6: memref<8x8x128xf32, #tpu.memory_space<vmem>>) attributes {dimension_semantics = [#tpu.dimension_semantics<arbitrary>, #tpu.dimension_semantics<arbitrary>], iteration_bounds = array<i64: 1, 1>, scalar_prefetch = 0 : i64, scratch_operands = 1 : i64, tpu.core_type = #tpu.core_type<tc>, window_params = [{transform_indices = @transform_0, window_bounds = array<i64: 16, 128>}, {transform_indices = @transform_1, window_bounds = array<i64: 16, 128>}, {transform_indices = @transform_2, window_bounds = array<i64: 16, 128>}, {transform_indices = @transform_3, window_bounds = array<i64: 1, 8, 8, 128>}]} {
    %c0_i32 = arith.constant 0 : i32
    %0 = arith.cmpi eq, %arg1, %c0_i32 : i32
    %1 = arith.extui %0 : i1 to i32
    %c0_i32_0 = arith.constant 0 : i32
    %2 = arith.cmpi ne, %1, %c0_i32_0 : i32
    scf.if %2 {
      %cst_54 = arith.constant 0.000000e+00 : f32
      %87 = vector.broadcast %cst_54 : f32 to vector<8x8x128xf32>
      %c0_55 = arith.constant 0 : index
      %c0_56 = arith.constant 0 : index
      %c0_57 = arith.constant 0 : index
      %88 = vector.load %arg6[%c0_55, %c0_56, %c0_57] : memref<8x8x128xf32, #tpu.memory_space<vmem>>, vector<8x8x128xf32>
      tpu.vector_store %arg6[%c0_55, %c0_56, %c0_57], %87 {strides = array<i32>} : memref<8x8x128xf32, #tpu.memory_space<vmem>>, vector<8x8x128xf32>,
    } else {
    }
    %cst = arith.constant 0.000000e+00 : f32
    %3 = vector.broadcast %cst : f32 to vector<8x128xf32>
    %c0 = arith.constant 0 : index
    %c0_1 = arith.constant 0 : index
    %4 = vector.load %arg2[%c0, %c0_1] : memref<16x128xf32, #tpu.memory_space<vmem>>, vector<8x128xf32>
    %c0_2 = arith.constant 0 : index
    %c0_3 = arith.constant 0 : index
    %5 = vector.load %arg3[%c0_2, %c0_3] : memref<16x128xf32, #tpu.memory_space<vmem>>, vector<8x128xf32>
    %c0_4 = arith.constant 0 : index
    %c0_5 = arith.constant 0 : index
    %6 = vector.load %arg4[%c0_4, %c0_5] : memref<16x128xf32, #tpu.memory_space<vmem>>, vector<8x128xf32>
    %7 = arith.addf %3, %4 : vector<8x128xf32>
    %8 = arith.addf %3, %5 : vector<8x128xf32>
    %9 = arith.addf %3, %6 : vector<8x128xf32>
    %10 = arith.mulf %4, %4 : vector<8x128xf32>
    %11 = arith.addf %3, %10 : vector<8x128xf32>
    %12 = arith.mulf %5, %5 : vector<8x128xf32>
    %13 = arith.addf %3, %12 : vector<8x128xf32>
    %14 = arith.mulf %6, %6 : vector<8x128xf32>
    %15 = arith.addf %3, %14 : vector<8x128xf32>
    %16 = arith.mulf %4, %6 : vector<8x128xf32>
    %17 = arith.addf %3, %16 : vector<8x128xf32>
    %18 = arith.mulf %5, %6 : vector<8x128xf32>
    %19 = arith.addf %3, %18 : vector<8x128xf32>
    %c8 = arith.constant 8 : index
    %c0_6 = arith.constant 0 : index
    %20 = vector.load %arg2[%c8, %c0_6] : memref<16x128xf32, #tpu.memory_space<vmem>>, vector<8x128xf32>
    %c8_7 = arith.constant 8 : index
    %c0_8 = arith.constant 0 : index
    %21 = vector.load %arg3[%c8_7, %c0_8] : memref<16x128xf32, #tpu.memory_space<vmem>>, vector<8x128xf32>
    %c8_9 = arith.constant 8 : index
    %c0_10 = arith.constant 0 : index
    %22 = vector.load %arg4[%c8_9, %c0_10] : memref<16x128xf32, #tpu.memory_space<vmem>>, vector<8x128xf32>
    %23 = arith.addf %7, %20 : vector<8x128xf32>
    %24 = arith.addf %8, %21 : vector<8x128xf32>
    %25 = arith.addf %9, %22 : vector<8x128xf32>
    %26 = arith.mulf %20, %20 : vector<8x128xf32>
    %27 = arith.addf %11, %26 : vector<8x128xf32>
    %28 = arith.mulf %21, %21 : vector<8x128xf32>
    %29 = arith.addf %13, %28 : vector<8x128xf32>
    %30 = arith.mulf %22, %22 : vector<8x128xf32>
    %31 = arith.addf %15, %30 : vector<8x128xf32>
    %32 = arith.mulf %20, %22 : vector<8x128xf32>
    %33 = arith.addf %17, %32 : vector<8x128xf32>
    %34 = arith.mulf %21, %22 : vector<8x128xf32>
    %35 = arith.addf %19, %34 : vector<8x128xf32>
    %c0_11 = arith.constant 0 : index
    %c0_12 = arith.constant 0 : index
    %c0_13 = arith.constant 0 : index
    %36 = vector.load %arg6[%c0_11, %c0_12, %c0_13] : memref<8x8x128xf32, #tpu.memory_space<vmem>>, vector<1x8x128xf32>
    %37 = vector.shape_cast %36 : vector<1x8x128xf32> to vector<8x128xf32>
    %38 = arith.addf %37, %23 : vector<8x128xf32>
    %c0_14 = arith.constant 0 : index
    %c0_15 = arith.constant 0 : index
    %c0_16 = arith.constant 0 : index
    %39 = vector.load %arg6[%c0_14, %c0_15, %c0_16] : memref<8x8x128xf32, #tpu.memory_space<vmem>>, vector<1x8x128xf32>
    %40 = vector.shape_cast %39 : vector<1x8x128xf32> to vector<8x128xf32>
    %41 = vector.shape_cast %38 : vector<8x128xf32> to vector<1x8x128xf32>
    tpu.vector_store %arg6[%c0_14, %c0_15, %c0_16], %41 {strides = array<i32>} : memref<8x8x128xf32, #tpu.memory_space<vmem>>, vector<1x8x128xf32>,
    %c1 = arith.constant 1 : index
    %c0_17 = arith.constant 0 : index
    %c0_18 = arith.constant 0 : index
    %42 = vector.load %arg6[%c1, %c0_17, %c0_18] : memref<8x8x128xf32, #tpu.memory_space<vmem>>, vector<1x8x128xf32>
    %43 = vector.shape_cast %42 : vector<1x8x128xf32> to vector<8x128xf32>
    %44 = arith.addf %43, %24 : vector<8x128xf32>
    %c1_19 = arith.constant 1 : index
    %c0_20 = arith.constant 0 : index
    %c0_21 = arith.constant 0 : index
    %45 = vector.load %arg6[%c1_19, %c0_20, %c0_21] : memref<8x8x128xf32, #tpu.memory_space<vmem>>, vector<1x8x128xf32>
    %46 = vector.shape_cast %45 : vector<1x8x128xf32> to vector<8x128xf32>
    %47 = vector.shape_cast %44 : vector<8x128xf32> to vector<1x8x128xf32>
    tpu.vector_store %arg6[%c1_19, %c0_20, %c0_21], %47 {strides = array<i32>} : memref<8x8x128xf32, #tpu.memory_space<vmem>>, vector<1x8x128xf32>,
    %c2 = arith.constant 2 : index
    %c0_22 = arith.constant 0 : index
    %c0_23 = arith.constant 0 : index
    %48 = vector.load %arg6[%c2, %c0_22, %c0_23] : memref<8x8x128xf32, #tpu.memory_space<vmem>>, vector<1x8x128xf32>
    %49 = vector.shape_cast %48 : vector<1x8x128xf32> to vector<8x128xf32>
    %50 = arith.addf %49, %25 : vector<8x128xf32>
    %c2_24 = arith.constant 2 : index
    %c0_25 = arith.constant 0 : index
    %c0_26 = arith.constant 0 : index
    %51 = vector.load %arg6[%c2_24, %c0_25, %c0_26] : memref<8x8x128xf32, #tpu.memory_space<vmem>>, vector<1x8x128xf32>
    %52 = vector.shape_cast %51 : vector<1x8x128xf32> to vector<8x128xf32>
    %53 = vector.shape_cast %50 : vector<8x128xf32> to vector<1x8x128xf32>
    tpu.vector_store %arg6[%c2_24, %c0_25, %c0_26], %53 {strides = array<i32>} : memref<8x8x128xf32, #tpu.memory_space<vmem>>, vector<1x8x128xf32>,
    %c3 = arith.constant 3 : index
    %c0_27 = arith.constant 0 : index
    %c0_28 = arith.constant 0 : index
    %54 = vector.load %arg6[%c3, %c0_27, %c0_28] : memref<8x8x128xf32, #tpu.memory_space<vmem>>, vector<1x8x128xf32>
    %55 = vector.shape_cast %54 : vector<1x8x128xf32> to vector<8x128xf32>
    %56 = arith.addf %55, %27 : vector<8x128xf32>
    %c3_29 = arith.constant 3 : index
    %c0_30 = arith.constant 0 : index
    %c0_31 = arith.constant 0 : index
    %57 = vector.load %arg6[%c3_29, %c0_30, %c0_31] : memref<8x8x128xf32, #tpu.memory_space<vmem>>, vector<1x8x128xf32>
    %58 = vector.shape_cast %57 : vector<1x8x128xf32> to vector<8x128xf32>
    %59 = vector.shape_cast %56 : vector<8x128xf32> to vector<1x8x128xf32>
    tpu.vector_store %arg6[%c3_29, %c0_30, %c0_31], %59 {strides = array<i32>} : memref<8x8x128xf32, #tpu.memory_space<vmem>>, vector<1x8x128xf32>,
    %c4 = arith.constant 4 : index
    %c0_32 = arith.constant 0 : index
    %c0_33 = arith.constant 0 : index
    %60 = vector.load %arg6[%c4, %c0_32, %c0_33] : memref<8x8x128xf32, #tpu.memory_space<vmem>>, vector<1x8x128xf32>
    %61 = vector.shape_cast %60 : vector<1x8x128xf32> to vector<8x128xf32>
    %62 = arith.addf %61, %29 : vector<8x128xf32>
    %c4_34 = arith.constant 4 : index
    %c0_35 = arith.constant 0 : index
    %c0_36 = arith.constant 0 : index
    %63 = vector.load %arg6[%c4_34, %c0_35, %c0_36] : memref<8x8x128xf32, #tpu.memory_space<vmem>>, vector<1x8x128xf32>
    %64 = vector.shape_cast %63 : vector<1x8x128xf32> to vector<8x128xf32>
    %65 = vector.shape_cast %62 : vector<8x128xf32> to vector<1x8x128xf32>
    tpu.vector_store %arg6[%c4_34, %c0_35, %c0_36], %65 {strides = array<i32>} : memref<8x8x128xf32, #tpu.memory_space<vmem>>, vector<1x8x128xf32>,
    %c5 = arith.constant 5 : index
    %c0_37 = arith.constant 0 : index
    %c0_38 = arith.constant 0 : index
    %66 = vector.load %arg6[%c5, %c0_37, %c0_38] : memref<8x8x128xf32, #tpu.memory_space<vmem>>, vector<1x8x128xf32>
    %67 = vector.shape_cast %66 : vector<1x8x128xf32> to vector<8x128xf32>
    %68 = arith.addf %67, %31 : vector<8x128xf32>
    %c5_39 = arith.constant 5 : index
    %c0_40 = arith.constant 0 : index
    %c0_41 = arith.constant 0 : index
    %69 = vector.load %arg6[%c5_39, %c0_40, %c0_41] : memref<8x8x128xf32, #tpu.memory_space<vmem>>, vector<1x8x128xf32>
    %70 = vector.shape_cast %69 : vector<1x8x128xf32> to vector<8x128xf32>
    %71 = vector.shape_cast %68 : vector<8x128xf32> to vector<1x8x128xf32>
    tpu.vector_store %arg6[%c5_39, %c0_40, %c0_41], %71 {strides = array<i32>} : memref<8x8x128xf32, #tpu.memory_space<vmem>>, vector<1x8x128xf32>,
    %c6 = arith.constant 6 : index
    %c0_42 = arith.constant 0 : index
    %c0_43 = arith.constant 0 : index
    %72 = vector.load %arg6[%c6, %c0_42, %c0_43] : memref<8x8x128xf32, #tpu.memory_space<vmem>>, vector<1x8x128xf32>
    %73 = vector.shape_cast %72 : vector<1x8x128xf32> to vector<8x128xf32>
    %74 = arith.addf %73, %33 : vector<8x128xf32>
    %c6_44 = arith.constant 6 : index
    %c0_45 = arith.constant 0 : index
    %c0_46 = arith.constant 0 : index
    %75 = vector.load %arg6[%c6_44, %c0_45, %c0_46] : memref<8x8x128xf32, #tpu.memory_space<vmem>>, vector<1x8x128xf32>
    %76 = vector.shape_cast %75 : vector<1x8x128xf32> to vector<8x128xf32>
    %77 = vector.shape_cast %74 : vector<8x128xf32> to vector<1x8x128xf32>
    tpu.vector_store %arg6[%c6_44, %c0_45, %c0_46], %77 {strides = array<i32>} : memref<8x8x128xf32, #tpu.memory_space<vmem>>, vector<1x8x128xf32>,
    %c7 = arith.constant 7 : index
    %c0_47 = arith.constant 0 : index
    %c0_48 = arith.constant 0 : index
    %78 = vector.load %arg6[%c7, %c0_47, %c0_48] : memref<8x8x128xf32, #tpu.memory_space<vmem>>, vector<1x8x128xf32>
    %79 = vector.shape_cast %78 : vector<1x8x128xf32> to vector<8x128xf32>
    %80 = arith.addf %79, %35 : vector<8x128xf32>
    %c7_49 = arith.constant 7 : index
    %c0_50 = arith.constant 0 : index
    %c0_51 = arith.constant 0 : index
    %81 = vector.load %arg6[%c7_49, %c0_50, %c0_51] : memref<8x8x128xf32, #tpu.memory_space<vmem>>, vector<1x8x128xf32>
    %82 = vector.shape_cast %81 : vector<1x8x128xf32> to vector<8x128xf32>
    %83 = vector.shape_cast %80 : vector<8x128xf32> to vector<1x8x128xf32>
    tpu.vector_store %arg6[%c7_49, %c0_50, %c0_51], %83 {strides = array<i32>} : memref<8x8x128xf32, #tpu.memory_space<vmem>>, vector<1x8x128xf32>,
    %c0_i32_52 = arith.constant 0 : i32
    %84 = arith.cmpi eq, %arg1, %c0_i32_52 : i32
    %85 = arith.extui %84 : i1 to i32
    %c0_i32_53 = arith.constant 0 : i32
    %86 = arith.cmpi ne, %85, %c0_i32_53 : i32
    scf.if %86 {
      %c0_54 = arith.constant 0 : index
      %c0_55 = arith.constant 0 : index
      %c0_56 = arith.constant 0 : index
      %87 = vector.load %arg6[%c0_54, %c0_55, %c0_56] : memref<8x8x128xf32, #tpu.memory_space<vmem>>, vector<8x8x128xf32>
      %c0_57 = arith.constant 0 : index
      %c0_58 = arith.constant 0 : index
      %c0_59 = arith.constant 0 : index
      %c0_60 = arith.constant 0 : index
      %88 = vector.load %arg5[%c0_57, %c0_58, %c0_59, %c0_60] : memref<1x8x8x128xf32, #tpu.memory_space<vmem>>, vector<1x8x8x128xf32>
      %89 = vector.shape_cast %88 : vector<1x8x8x128xf32> to vector<8x8x128xf32>
      %90 = vector.shape_cast %87 : vector<8x8x128xf32> to vector<1x8x8x128xf32>
      tpu.vector_store %arg5[%c0_57, %c0_58, %c0_59, %c0_60], %90 {strides = array<i32>} : memref<1x8x8x128xf32, #tpu.memory_space<vmem>>, vector<1x8x8x128xf32>,
    } else {
    }
    return
  }
  func.func @transform_0(%arg0: i32, %arg1: i32) -> (i32, i32) {
    %c1_i32 = arith.constant 1 : i32
    %0 = arith.muli %arg0, %c1_i32 : i32
    %1 = arith.addi %0, %arg1 : i32
    %c0_i32 = arith.constant 0 : i32
    %c0_i32_0 = arith.constant 0 : i32
    return %1, %c0_i32 : i32, i32
  }
  func.func @transform_1(%arg0: i32, %arg1: i32) -> (i32, i32) {
    %c1_i32 = arith.constant 1 : i32
    %0 = arith.muli %arg0, %c1_i32 : i32
    %1 = arith.addi %0, %arg1 : i32
    %c0_i32 = arith.constant 0 : i32
    %c0_i32_0 = arith.constant 0 : i32
    return %1, %c0_i32 : i32, i32
  }
  func.func @transform_2(%arg0: i32, %arg1: i32) -> (i32, i32) {
    %c1_i32 = arith.constant 1 : i32
    %0 = arith.muli %arg0, %c1_i32 : i32
    %1 = arith.addi %0, %arg1 : i32
    %c0_i32 = arith.constant 0 : i32
    %c0_i32_0 = arith.constant 0 : i32
    return %1, %c0_i32 : i32, i32
  }
  func.func @transform_3(%arg0: i32, %arg1: i32) -> (i32, i32, i32, i32) {
    %c0_i32 = arith.constant 0 : i32
    %c0_i32_0 = arith.constant 0 : i32
    %c0_i32_1 = arith.constant 0 : i32
    %c0_i32_2 = arith.constant 0 : i32
    return %arg0, %c0_i32, %c0_i32_0, %c0_i32_1 : i32, i32, i32, i32
  }
}

</mosaic_0001>

<llo_original>
// kernel: reg_forward.1
$region0: #{reg_forward.1}
  #allocation0 [shape = 'u32[]', space=smem, size = 0x4, offset = 0x4, fixed_abs, tag = 'smem constant byte address 0x4 - core index']
  #allocation1 [shape = 'u32[72,128]{1,0:T(1,128)}', space=vmem, size = 0x9000, scoped, tag = 'internal scratch']
  #allocation2 [shape = 'f32[8,8,128]{2,1,0:T(8,128)}', space=vmem, size = 0x8000, scoped, tag = 'scratch operand']
  %s0 = inlined_call_operand.vmem [shape: f32[16,128], index: 0, kind: input, shape index: {}]
  %s1 = inlined_call_operand.vmem [shape: f32[16,128], index: 1, kind: input, shape index: {}]
  %s2 = inlined_call_operand.vmem [shape: f32[16,128], index: 2, kind: input, shape index: {}]
  %s3 = inlined_call_operand.vmem [shape: f32[1,8,8,128], index: 3, kind: output, shape index: {}]
  %s4 = sld [smem:[#allocation0]]
  $region30: #{reg_forward.1} parent=0
    _
  %s6 = ssub.s32 1, %s4
  %s7 = scalar_select 0, %s6, %s4
  // Predicated region
  $region2: #{reg_forward.1} parent=0 // pred_check
    _
  $region3: #{reg_forward.1} parent=0 // pred_check_branch
    %9 = sbr.rel (0) target = $region5
  $region4: #{reg_forward.1} parent=0 // pred_region
    %s10 = sadd.s32 0, 0
    %s11 = smul.u32 2, %s10
    %p12 = scmp.lt.s32.totalorder %s11, 1
    %s13 = scalar_select %p12, %s11, 1
    %s14 = smul.addr %s13, 8
    %s15 = scalar_lea.vmem %s0, %s14
    %s16 = sadd.s32 0, 0
    %s17 = smul.u32 2, %s16
  $region5: #{reg_forward.1} parent=0 // pred_fallthru
    _
  // Predicated region
  $region6: #{reg_forward.1} parent=0 // pred_check
    _
  $region7: #{reg_forward.1} parent=0 // pred_check_branch
    %19 = sbr.rel (0) target = $region9
  $region8: #{reg_forward.1} parent=0 // pred_region
    %s20 = sadd.s32 0, 0
    %s21 = smul.u32 2, %s20
    %p22 = scmp.lt.s32.totalorder %s21, 1
    %s23 = scalar_select %p22, %s21, 1
    %s24 = smul.addr %s23, 8
    %s25 = scalar_lea.vmem %s1, %s24
    %s26 = sadd.s32 0, 0
    %s27 = smul.u32 2, %s26
  $region9: #{reg_forward.1} parent=0 // pred_fallthru
    _
  // Predicated region
  $region10: #{reg_forward.1} parent=0 // pred_check
    _
  $region11: #{reg_forward.1} parent=0 // pred_check_branch
    %29 = sbr.rel (0) target = $region13
  $region12: #{reg_forward.1} parent=0 // pred_region
    %s30 = sadd.s32 0, 0
    %s31 = smul.u32 2, %s30
    %p32 = scmp.lt.s32.totalorder %s31, 1
    %s33 = scalar_select %p32, %s31, 1
    %s34 = smul.addr %s33, 8
    %s35 = scalar_lea.vmem %s2, %s34
    %s36 = sadd.s32 0, 0
    %s37 = smul.u32 2, %s36
  $region13: #{reg_forward.1} parent=0 // pred_fallthru
    _
  %s38 = sadd.s32 0, 0
  %s39 = smul.u32 2, %s38
  %p40 = scmp.lt.s32.totalorder %s39, 1
  %s41 = scalar_select %p40, %s39, 1
  %s42 = smul.addr %s41, 8
  %s43 = scalar_lea.vmem %s0, %s42
  %s44 = sadd.s32 0, 0
  %s45 = smul.u32 2, %s44
  %p46 = scmp.lt.s32.totalorder %s45, 1
  %s47 = scalar_select %p46, %s45, 1
  %s48 = smul.addr %s47, 8
  %s49 = scalar_lea.vmem %s1, %s48
  %s50 = sadd.s32 0, 0
  %s51 = smul.u32 2, %s50
  %p52 = scmp.lt.s32.totalorder %s51, 1
  %s53 = scalar_select %p52, %s51, 1
  %s54 = smul.addr %s53, 8
  %s55 = scalar_lea.vmem %s2, %s54
  %s56 = sadd.s32 0, 0
  %s57 = smul.u32 2, %s56
  %p58 = scmp.lt.s32.totalorder %s57, 1
  %s59 = scalar_select %p58, %s57, 1
  %s60 = smul.addr %s59, 8
  %s61 = scalar_lea.vmem %s0, %s60
  %s62 = sadd.s32 0, 0
  %s63 = smul.u32 2, %s62
  %s64 = sadd.s32 0, 0
  %s65 = smul.u32 2, %s64
  %p66 = scmp.lt.s32.totalorder %s65, 1
  %s67 = scalar_select %p66, %s65, 1
  %s68 = smul.addr %s67, 8
  %s69 = scalar_lea.vmem %s1, %s68
  %s70 = sadd.s32 0, 0
  %s71 = smul.u32 2, %s70
  %s72 = sadd.s32 0, 0
  %s73 = smul.u32 2, %s72
  %p74 = scmp.lt.s32.totalorder %s73, 1
  %s75 = scalar_select %p74, %s73, 1
  %s76 = smul.addr %s75, 8
  %s77 = scalar_lea.vmem %s2, %s76
  %s78 = sadd.s32 0, 0
  %s79 = smul.u32 2, %s78
  %p80 = scmp.eq.s32.totalorder 0, 0
  // Predicated region
  $region14: #{reg_forward.1} parent=0 // pred_check
    %p81 = pneg %p80
  $region15: #{reg_forward.1} parent=0 // pred_check_branch
    %83 = sbr.rel (%p81) target = $region17
  $region16: #{reg_forward.1} parent=0 // pred_region
    %84 = vst [vmem:[#allocation2] sm:$0xff] 0.0
    %85 = vst [vmem:[#allocation2 + $0x8] sm:$0xff] 0.0
    %86 = vst [vmem:[#allocation2 + $0x10] sm:$0xff] 0.0
    %87 = vst [vmem:[#allocation2 + $0x18] sm:$0xff] 0.0
    %88 = vst [vmem:[#allocation2 + $0x20] sm:$0xff] 0.0
    %89 = vst [vmem:[#allocation2 + $0x28] sm:$0xff] 0.0
    %90 = vst [vmem:[#allocation2 + $0x30] sm:$0xff] 0.0
    %91 = vst [vmem:[#allocation2 + $0x38] sm:$0xff] 0.0
  $region17: #{reg_forward.1} parent=0 // pred_fallthru
    _
  %v92 = vld [vmem:[%s61] sm:$0xff]
  %v93 = vld [vmem:[%s69] sm:$0xff]
  %v94 = vld [vmem:[%s77] sm:$0xff]
  %v95 = vadd.f32 %v92, 0.0
  %v96 = vadd.f32 %v93, 0.0
  %v97 = vadd.f32 %v94, 0.0
  %v98 = vmul.f32 %v92, %v92
  %v99 = vadd.f32 %v98, 0.0
  %v100 = vmul.f32 %v93, %v93
  %v101 = vadd.f32 %v100, 0.0
  %v102 = vmul.f32 %v94, %v94
  %v103 = vadd.f32 %v102, 0.0
  %v104 = vmul.f32 %v92, %v94
  %v105 = vadd.f32 %v104, 0.0
  %v106 = vmul.f32 %v93, %v94
  %v107 = vadd.f32 %v106, 0.0
  %v108 = vld [vmem:[%s61 + $0x8] sm:$0xff]
  %v109 = vld [vmem:[%s69 + $0x8] sm:$0xff]
  %v110 = vld [vmem:[%s77 + $0x8] sm:$0xff]
  %v111 = vadd.f32 %v95, %v108
  %v112 = vadd.f32 %v96, %v109
  %v113 = vadd.f32 %v97, %v110
  %v114 = vmul.f32 %v108, %v108
  %v115 = vadd.f32 %v99, %v114
  %v116 = vmul.f32 %v109, %v109
  %v117 = vadd.f32 %v101, %v116
  %v118 = vmul.f32 %v110, %v110
  %v119 = vadd.f32 %v103, %v118
  %v120 = vmul.f32 %v108, %v110
  %v121 = vadd.f32 %v105, %v120
  %v122 = vmul.f32 %v109, %v110
  %v123 = vadd.f32 %v107, %v122
  %v124 = vld [vmem:[#allocation2] sm:$0xff]
  %v125 = vadd.f32 %v124, %v111
  %126 = vst [vmem:[#allocation2] sm:$0xff] %v125
  %s127 = scalar_lea.vmem [#allocation2], 8
  %v128 = vld [vmem:[%s127] sm:$0xff]
  %v129 = vadd.f32 %v128, %v112
  %130 = vst [vmem:[%s127] sm:$0xff] %v129
  %s131 = scalar_lea.vmem [#allocation2], 16
  %v132 = vld [vmem:[%s131] sm:$0xff]
  %v133 = vadd.f32 %v132, %v113
  %134 = vst [vmem:[%s131] sm:$0xff] %v133
  %s135 = scalar_lea.vmem [#allocation2], 24
  %v136 = vld [vmem:[%s135] sm:$0xff]
  %v137 = vadd.f32 %v136, %v115
  %138 = vst [vmem:[%s135] sm:$0xff] %v137
  %s139 = scalar_lea.vmem [#allocation2], 32
  %v140 = vld [vmem:[%s139] sm:$0xff]
  %v141 = vadd.f32 %v140, %v117
  %142 = vst [vmem:[%s139] sm:$0xff] %v141
  %s143 = scalar_lea.vmem [#allocation2], 40
  %v144 = vld [vmem:[%s143] sm:$0xff]
  %v145 = vadd.f32 %v144, %v119
  %146 = vst [vmem:[%s143] sm:$0xff] %v145
  %s147 = scalar_lea.vmem [#allocation2], 48
  %v148 = vld [vmem:[%s147] sm:$0xff]
  %v149 = vadd.f32 %v148, %v121
  %150 = vst [vmem:[%s147] sm:$0xff] %v149
  %s151 = scalar_lea.vmem [#allocation2], 56
  %v152 = vld [vmem:[%s151] sm:$0xff]
  %v153 = vadd.f32 %v152, %v123
  %154 = vst [vmem:[%s151] sm:$0xff] %v153
  // Predicated region
  $region18: #{reg_forward.1} parent=0 // pred_check
    %p155 = pneg %p80
  $region19: #{reg_forward.1} parent=0 // pred_check_branch
    %157 = sbr.rel (%p155) target = $region21
  $region20: #{reg_forward.1} parent=0 // pred_region
    %v158 = vld [vmem:[#allocation2] sm:$0xff]
    %v159 = vld [vmem:[#allocation2 + $0x8] sm:$0xff]
    %v160 = vld [vmem:[#allocation2 + $0x10] sm:$0xff]
    %v161 = vld [vmem:[#allocation2 + $0x18] sm:$0xff]
    %v162 = vld [vmem:[#allocation2 + $0x20] sm:$0xff]
    %v163 = vld [vmem:[#allocation2 + $0x28] sm:$0xff]
    %v164 = vld [vmem:[#allocation2 + $0x30] sm:$0xff]
    %v165 = vld [vmem:[#allocation2 + $0x38] sm:$0xff]
    %166 = vst [vmem:[%s3] sm:$0xff] %v158
    %167 = vst [vmem:[%s3 + $0x8] sm:$0xff] %v159
    %168 = vst [vmem:[%s3 + $0x10] sm:$0xff] %v160
    %169 = vst [vmem:[%s3 + $0x18] sm:$0xff] %v161
    %170 = vst [vmem:[%s3 + $0x20] sm:$0xff] %v162
    %171 = vst [vmem:[%s3 + $0x28] sm:$0xff] %v163
    %172 = vst [vmem:[%s3 + $0x30] sm:$0xff] %v164
    %173 = vst [vmem:[%s3 + $0x38] sm:$0xff] %v165
  $region21: #{reg_forward.1} parent=0 // pred_fallthru
    _
  // Predicated region
  $region22: #{reg_forward.1} parent=0 // pred_check
    _
  $region23: #{reg_forward.1} parent=0 // pred_check_branch
    %175 = sbr.rel (0) target = $region25
  $region24: #{reg_forward.1} parent=0 // pred_region
    _
  $region25: #{reg_forward.1} parent=0 // pred_fallthru
    _
  // Predicated region
  $region26: #{reg_forward.1} parent=0 // pred_check
    _
  $region27: #{reg_forward.1} parent=0 // pred_check_branch
    %177 = sbr.rel (0) target = $region29
  $region28: #{reg_forward.1} parent=0 // pred_region
    _
  $region29: #{reg_forward.1} parent=0 // pred_fallthru
    _

</llo_original>
